<compile_context>
chip_gen: v5e
topology: v5e:2x2
jax: 0.10.0
libtpu: 0.0.40
codegen_flags: <defaults>
</compile_context>

<pallas_src>
import functools
from typing import NamedTuple

import numpy as np

import jax
import jax.numpy as jnp
from jax.experimental import pallas as pl
from jax.experimental.pallas import tpu as pltpu


_LANES = 128  # lane width of the packed weight slab


# ----------------------------------------------------------------------------
# Static configuration
# ----------------------------------------------------------------------------
class _Cfg(NamedTuple):
    k1: int        # conv1 kernel size
    s1: int        # conv1 stride
    p1: int        # conv1 output positions (OH1*OW1)
    p1_pad: int    # p1 rounded up to a sublane multiple
    kk2: int       # conv2 taps (4*4)
    p2: int        # conv2 output positions (OH2*OW2)
    n_actions: int


def _conv_out(n, k, s):
    return (n - k) // s + 1


def _round_up(n, m):
    return -(-n // m) * m


# ----------------------------------------------------------------------------
# Host-side packing (runs once)
# ----------------------------------------------------------------------------
def _pack_slab(arrays):
    """arrays: list of (name, 2-D array).  Returns (slab [R,128] f32, offsets)."""
    blocks, off, row = [], {}, 0
    for name, a in arrays:
        a = np.asarray(a, np.float32)
        r, c = a.shape
        assert c <= _LANES, (name, a.shape)
        rp = _round_up(r, 8)
        buf = np.zeros((rp, _LANES), np.float32)
        buf[:r, :c] = a
        off[name] = (row, r, c)
        blocks.append(buf)
        row += rp
    return np.concatenate(blocks, axis=0), off


def pack_params(params, input_dims, fc1_dims, n_actions):
    """Convert PyTorch-layout params into the kernel's packed slab (once)."""
    C, H, W = input_dims
    oh1, ow1 = _conv_out(H, 8, 4), _conv_out(W, 8, 4)
    oh2, ow2 = _conv_out(oh1, 4, 2), _conv_out(ow1, 4, 2)
    oh3, ow3 = _conv_out(oh2, 4, 1), _conv_out(ow2, 4, 1)
    assert oh3 == 1 and ow3 == 1, (
        "fused kernel is specialised to conv3 producing a 1x1 output, got "
        f"{oh3}x{ow3}")
    p1, p2 = oh1 * ow1, oh2 * ow2
    p1_pad = _round_up(p1, 8)
    assert p1_pad <= _LANES
    kk2 = 16

    w1 = np.asarray(params["conv1_w"], np.float32)   # [32, C, 8, 8]
    w2 = np.asarray(params["conv2_w"], np.float32)   # [64, 32, 4, 4]
    w3 = np.asarray(params["conv3_w"], np.float32)   # [64, 64, 4, 4]
    oc1, oc2, oc3 = w1.shape[0], w2.shape[0], w3.shape[0]
    ic2, ic3 = w2.shape[1], w3.shape[1]

    # conv2 tap-gather matrix: S2T[(r, p), q] = 1 iff conv1-output position
    # q = oh*OW1 + ow is tap r = kh*4 + kw of conv2 output p = a*OW2 + b.
    # Columns q >= p1 (the zero-padded rows of x1) stay zero.
    s2t = np.zeros((kk2 * p2, p1_pad), np.float32)
    for kh in range(4):
        for kw in range(4):
            r = kh * 4 + kw
            for a in range(oh2):
                for b in range(ow2):
                    p = a * ow2 + b
                    q = (a * 2 + kh) * ow1 + (b * 2 + kw)
                    s2t[r * p2 + p, q] = 1.0

    arrays = [
        # conv1:  x1 = col1 @ w1        (contraction order (c, kh, kw))
        ("w1",   w1.reshape(oc1, -1).T),                                    # [C*64, 32]
        ("b1",   np.asarray(params["conv1_b"], np.float32).reshape(1, -1)),
        # conv2 tap gather + merged weight (rows ordered (tap, ic))
        ("s2",   s2t),                                                      # [kk2*p2, p1_pad]
        ("w2",   np.transpose(w2.reshape(oc2, ic2, kk2), (2, 1, 0))
                   .reshape(kk2 * ic2, oc2)),                               # [512, 64]
        ("b2",   np.asarray(params["conv2_b"], np.float32).reshape(1, -1)),
        # conv3 merged weight (rows ordered (spatial position p, ic))
        ("w3",   np.transpose(w3.reshape(oc3, ic3, 16), (2, 1, 0))
                   .reshape(16 * ic3, oc3)),                                # [1024, 64]
        ("b3",   np.asarray(params["conv3_b"], np.float32).reshape(1, -1)),
        # fc1 stored [in, out]  (torch flatten order of conv3 output = (oc3))
        ("fc1",  np.asarray(params["fc1_w"], np.float32)),                  # [64, fc1]
        ("fc1b", np.asarray(params["fc1_b"], np.float32).reshape(1, -1)),
        # merged policy/value head, stored [in, n_actions+1]
        ("head", np.concatenate([np.asarray(params["policy_w"], np.float32),
                                 np.asarray(params["value_w"], np.float32)],
                                axis=1)),                                   # [fc1, na+1]
        ("headb", np.concatenate([np.asarray(params["policy_b"], np.float32),
                                  np.asarray(params["value_b"], np.float32)]
                                 ).reshape(1, -1)),                         # [1, na+1]
    ]
    slab_np, off = _pack_slab(arrays)
    packed = {"slab": jnp.asarray(slab_np), "off": off}
    cfg = _Cfg(k1=8, s1=4, p1=p1, p1_pad=p1_pad, kk2=kk2, p2=p2,
               n_actions=n_actions)
    return packed, cfg


def _im2col_T(x, k, stride, rows_pad):
    """x: [C, H, W] -> [rows_pad, C*k*k]; row p = oh*OW+ow, column (c, kh, kw)."""
    C, H, W = x.shape
    OH = (H - k) // stride + 1
    OW = (W - k) // stride + 1
    taps = []
    for i in range(k):
        for j in range(k):
            taps.append(x[:, i:i + stride * OH:stride, j:j + stride * OW:stride])
    col = jnp.stack(taps, axis=1).reshape(C * k * k, OH * OW)   # rows (c, kh, kw)
    colT = col.T                                                # [P1, C*k*k]
    return jnp.pad(colT, ((0, rows_pad - OH * OW), (0, 0)))


# ----------------------------------------------------------------------------
# The single fused Pallas kernel
# ----------------------------------------------------------------------------
def _fused_kernel(col1_ref, slab_ref, out_ref, *, off, kk2, p2, n_actions):
    f32 = jnp.float32

    def blk(name):
        r0, nr, nc = off[name]
        return slab_ref[r0:r0 + nr, 0:nc]     # static slice of the weight slab

    def dot(a, b):
        return jnp.dot(a, b, preferred_element_type=f32)

    # ---- conv1: relu(col1 @ W1 + b1)   -> [p1_pad, 32]  (positions x channels)
    x1 = jnp.maximum(dot(col1_ref[...], blk("w1")) + blk("b1"), 0.0)

    # ---- conv2: gather the 16 taps with ONE 0/1-matrix matmul, restack the
    #      (8-aligned) per-tap sublane blocks onto the lane axis, then a single
    #      deep-K matmul (K = kk2*32 = 512).
    g = dot(blk("s2"), x1)                                          # [kk2*p2, 32]
    col2 = jnp.concatenate(
        [g[r * p2:(r + 1) * p2, :] for r in range(kk2)], axis=1)    # [p2, kk2*32]
    x2 = jnp.maximum(dot(col2, blk("w2")) + blk("b2"), 0.0)         # [p2, 64]

    # ---- conv3 (1x1 output): flatten x2 into one lane-dense row and use a
    #      single K = p2*64 = 1024 matmul.
    x2row = jnp.concatenate(
        [x2[p:p + 1, :] for p in range(p2)], axis=1)                # [1, p2*64]
    x3 = jnp.maximum(dot(x2row, blk("w3")) + blk("b3"), 0.0)        # [1, 64]

    # ---- fc1
    h = jnp.maximum(dot(x3, blk("fc1")) + blk("fc1b"), 0.0)         # [1, fc1]

    # ---- merged policy/value head; softmax over the lane axis (exact recip)
    z = dot(h, blk("head")) + blk("headb")                          # [1, na+1]
    logits = z[:, 0:n_actions]
    e = jnp.exp(logits - jnp.max(logits, axis=1, keepdims=True))
    policy = e / jnp.sum(e, axis=1, keepdims=True)
    out_ref[...] = jnp.concatenate(
        [policy, z[:, n_actions:n_actions + 1]], axis=1).astype(out_ref.dtype)


def _fused_forward(col1, slab, off, cfg):
    kernel = functools.partial(_fused_kernel, off=off, kk2=cfg.kk2, p2=cfg.p2,
                               n_actions=cfg.n_actions)
    return pl.pallas_call(
        kernel,
        out_shape=jax.ShapeDtypeStruct((1, cfg.n_actions + 1), jnp.float32),
        in_specs=[pl.BlockSpec(memory_space=pltpu.MemorySpace.VMEM),
                  pl.BlockSpec(memory_space=pltpu.MemorySpace.VMEM)],
        out_specs=pl.BlockSpec(memory_space=pltpu.MemorySpace.VMEM),
    )(col1, slab)


# ----------------------------------------------------------------------------
# CNN_AC forward
# ----------------------------------------------------------------------------
def cnn_ac_forward(obs, packed, cfg):
    # obs: [C, H, W]  (the PyTorch module adds the batch dim of 1 internally)
    col1 = _im2col_T(obs.astype(jnp.float32), cfg.k1, cfg.s1, cfg.p1_pad)
    out = _fused_forward(col1, packed["slab"], packed["off"], cfg)
    policy = out[:, 0:cfg.n_actions]                   # [1, n_actions]
    value = out[:, cfg.n_actions:cfg.n_actions + 1]    # [1, 1]
    return policy, value


# ----------------------------------------------------------------------------
# Deterministic parameter construction (shapes from CNN_AC.__init__)
# ----------------------------------------------------------------------------
def init_params(key, input_dims, fc1_dims, n_actions):
    C, H, W = input_dims
    h1, w1 = _conv_out(H, 8, 4), _conv_out(W, 8, 4)
    h2, w2 = _conv_out(h1, 4, 2), _conv_out(w1, 4, 2)
    h3, w3 = _conv_out(h2, 4, 1), _conv_out(w2, 4, 1)
    conv_flat = 64 * h3 * w3

    keys = jax.random.split(key, 12)

    def u(k, shape, fan_in):
        bound = 1.0 / jnp.sqrt(jnp.float32(fan_in))
        return jax.random.uniform(k, shape, jnp.float32, -bound, bound)

    return {
        "conv1_w": u(keys[0], (32, C, 8, 8), C * 8 * 8),
        "conv1_b": u(keys[1], (32,), C * 8 * 8),
        "conv2_w": u(keys[2], (64, 32, 4, 4), 32 * 4 * 4),
        "conv2_b": u(keys[3], (64,), 32 * 4 * 4),
        "conv3_w": u(keys[4], (64, 64, 4, 4), 64 * 4 * 4),
        "conv3_b": u(keys[5], (64,), 64 * 4 * 4),
        # Linear weights stored as [in, out] (= torch weight.T)
        "fc1_w": u(keys[6], (conv_flat, fc1_dims), conv_flat),
        "fc1_b": u(keys[7], (fc1_dims,), conv_flat),
        "policy_w": u(keys[8], (fc1_dims, n_actions), fc1_dims),
        "policy_b": u(keys[9], (n_actions,), fc1_dims),
        "value_w": u(keys[10], (fc1_dims, 1), fc1_dims),
        "value_b": u(keys[11], (1,), fc1_dims),
    }


# ----------------------------------------------------------------------------
# Pure-JAX/XLA reference (same math as the PyTorch module) for validation
# ----------------------------------------------------------------------------
def _reference_forward(obs, params):
    x = obs[None].astype(jnp.float32)

    def conv(x, w, b, s):
        y = jax.lax.conv_general_dilated(
            x, w, (s, s), "VALID", dimension_numbers=("NCHW", "OIHW", "NCHW"))
        return jax.nn.relu(y + b.reshape(1, -1, 1, 1))

    x = conv(x, params["conv1_w"], params["conv1_b"], 4)
    x = conv(x, params["conv2_w"], params["conv2_b"], 2)
    x = conv(x, params["conv3_w"], params["conv3_b"], 1)
    flat = x.reshape(1, -1)
    h = jax.nn.relu(flat @ params["fc1_w"] + params["fc1_b"])
    policy = jax.nn.softmax(h @ params["policy_w"] + params["policy_b"], axis=-1)
    value = h @ params["value_w"] + params["value_b"]
    return policy, value


if __name__ == "__main__":
    # Shapes consistent with the module's conv chain:
    # 48 -> conv1(k8,s4) -> 11 -> conv2(k4,s2) -> 4 -> conv3(k4,s1) -> 1
    input_dims = (4, 48, 48)     # parameters.input_dims (C, H, W)
    fc1_dims = 32                # parameters.hidden_dims[0]
    n_actions = 4                # parameters.action_dims

    key = jax.random.PRNGKey(0)
    pkey, okey = jax.random.split(key)
    params = init_params(pkey, input_dims, fc1_dims, n_actions)
    obs = jax.random.normal(okey, input_dims, dtype=jnp.float32)

    packed, cfg = pack_params(params, input_dims, fc1_dims, n_actions)
    fwd = jax.jit(functools.partial(cnn_ac_forward, packed=packed, cfg=cfg))
    policy, value = fwd(obs)
    jax.block_until_ready((policy, value))

    assert policy.shape == (1, n_actions)
    assert value.shape == (1, 1)
    assert abs(float(jnp.sum(policy)) - 1.0) < 1e-4   # exact-reciprocal softmax

    # cross-check against a pure-JAX/XLA reference of the same module
    ref_policy, ref_value = _reference_forward(obs, params)
    assert jnp.allclose(policy, ref_policy, atol=2e-3, rtol=2e-3)
    assert jnp.allclose(value, ref_value, atol=2e-3, rtol=2e-3)

    print("KERNEL_OK")
</pallas_src>

<mosaic_0001>
module attributes {stable_mosaic.version = 11 : i64} {
  func.func @_fused_kernel(%arg0: memref<128x256xf32, #tpu.memory_space<vmem>>, %arg1: memref<2184x128xf32, #tpu.memory_space<vmem>>, %arg2: memref<1x5xf32, #tpu.memory_space<vmem>>) attributes {dimension_semantics = [], scalar_prefetch = 0 : i64, scratch_operands = 0 : i64, tpu.core_type = #tpu.core_type<tc>} {
    %c0 = arith.constant 0 : index
    %c0_0 = arith.constant 0 : index
    %0 = vector.load %arg0[%c0, %c0_0] : memref<128x256xf32, #tpu.memory_space<vmem>>, vector<128x256xf32>
    %c0_1 = arith.constant 0 : index
    %c0_2 = arith.constant 0 : index
    %1 = vector.load %arg1[%c0_1, %c0_2] : memref<2184x128xf32, #tpu.memory_space<vmem>>, vector<256x32xf32>
    %cst = arith.constant dense<0.000000e+00> : vector<128x32xf32>
    %2 = tpu.matmul %0, %1, %cst {dimension_numbers = #tpu.dot_dimension_numbers<[1], [0], [0], [1], [0, 0, 1, 1], [], []>} : vector<128x256xf32>, vector<256x32xf32>, vector<128x32xf32> -> vector<128x32xf32>
    %c256 = arith.constant 256 : index
    %c0_3 = arith.constant 0 : index
    %3 = vector.load %arg1[%c256, %c0_3] : memref<2184x128xf32, #tpu.memory_space<vmem>>, vector<1x32xf32>
    %4 = vector.broadcast %3 : vector<1x32xf32> to vector<128x32xf32>
    %5 = arith.addf %2, %4 : vector<128x32xf32>
    %cst_4 = arith.constant 0.000000e+00 : f32
    %6 = vector.broadcast %cst_4 : f32 to vector<128x32xf32>
    %7 = arith.maximumf %5, %6 : vector<128x32xf32>
    %c264 = arith.constant 264 : index
    %c0_5 = arith.constant 0 : index
    %8 = vector.load %arg1[%c264, %c0_5] : memref<2184x128xf32, #tpu.memory_space<vmem>>, vector<256x128xf32>
    %cst_6 = arith.constant dense<0.000000e+00> : vector<256x32xf32>
    %9 = tpu.matmul %8, %7, %cst_6 {dimension_numbers = #tpu.dot_dimension_numbers<[1], [0], [0], [1], [0, 0, 1, 1], [], []>} : vector<256x128xf32>, vector<128x32xf32>, vector<256x32xf32> -> vector<256x32xf32>
    %10 = vector.extract_strided_slice %9 {offsets = [0, 0], sizes = [16, 32], strides = [1, 1]} : vector<256x32xf32> to vector<16x32xf32>
    %11 = vector.extract_strided_slice %9 {offsets = [16, 0], sizes = [16, 32], strides = [1, 1]} : vector<256x32xf32> to vector<16x32xf32>
    %12 = vector.extract_strided_slice %9 {offsets = [32, 0], sizes = [16, 32], strides = [1, 1]} : vector<256x32xf32> to vector<16x32xf32>
    %13 = vector.extract_strided_slice %9 {offsets = [48, 0], sizes = [16, 32], strides = [1, 1]} : vector<256x32xf32> to vector<16x32xf32>
    %14 = vector.extract_strided_slice %9 {offsets = [64, 0], sizes = [16, 32], strides = [1, 1]} : vector<256x32xf32> to vector<16x32xf32>
    %15 = vector.extract_strided_slice %9 {offsets = [80, 0], sizes = [16, 32], strides = [1, 1]} : vector<256x32xf32> to vector<16x32xf32>
    %16 = vector.extract_strided_slice %9 {offsets = [96, 0], sizes = [16, 32], strides = [1, 1]} : vector<256x32xf32> to vector<16x32xf32>
    %17 = vector.extract_strided_slice %9 {offsets = [112, 0], sizes = [16, 32], strides = [1, 1]} : vector<256x32xf32> to vector<16x32xf32>
    %18 = vector.extract_strided_slice %9 {offsets = [128, 0], sizes = [16, 32], strides = [1, 1]} : vector<256x32xf32> to vector<16x32xf32>
    %19 = vector.extract_strided_slice %9 {offsets = [144, 0], sizes = [16, 32], strides = [1, 1]} : vector<256x32xf32> to vector<16x32xf32>
    %20 = vector.extract_strided_slice %9 {offsets = [160, 0], sizes = [16, 32], strides = [1, 1]} : vector<256x32xf32> to vector<16x32xf32>
    %21 = vector.extract_strided_slice %9 {offsets = [176, 0], sizes = [16, 32], strides = [1, 1]} : vector<256x32xf32> to vector<16x32xf32>
    %22 = vector.extract_strided_slice %9 {offsets = [192, 0], sizes = [16, 32], strides = [1, 1]} : vector<256x32xf32> to vector<16x32xf32>
    %23 = vector.extract_strided_slice %9 {offsets = [208, 0], sizes = [16, 32], strides = [1, 1]} : vector<256x32xf32> to vector<16x32xf32>
    %24 = vector.extract_strided_slice %9 {offsets = [224, 0], sizes = [16, 32], strides = [1, 1]} : vector<256x32xf32> to vector<16x32xf32>
    %25 = vector.extract_strided_slice %9 {offsets = [240, 0], sizes = [16, 32], strides = [1, 1]} : vector<256x32xf32> to vector<16x32xf32>
    %26 = tpu.concatenate %10, %11, %12, %13, %14, %15, %16, %17, %18, %19, %20, %21, %22, %23, %24, %25 in 1 : vector<16x32xf32>, vector<16x32xf32>, vector<16x32xf32>, vector<16x32xf32>, vector<16x32xf32>, vector<16x32xf32>, vector<16x32xf32>, vector<16x32xf32>, vector<16x32xf32>, vector<16x32xf32>, vector<16x32xf32>, vector<16x32xf32>, vector<16x32xf32>, vector<16x32xf32>, vector<16x32xf32>, vector<16x32xf32> -> vector<16x512xf32>
    %c520 = arith.constant 520 : index
    %c0_7 = arith.constant 0 : index
    %27 = vector.load %arg1[%c520, %c0_7] : memref<2184x128xf32, #tpu.memory_space<vmem>>, vector<512x64xf32>
    %cst_8 = arith.constant dense<0.000000e+00> : vector<16x64xf32>
    %28 = tpu.matmul %26, %27, %cst_8 {dimension_numbers = #tpu.dot_dimension_numbers<[1], [0], [0], [1], [0, 0, 1, 1], [], []>} : vector<16x512xf32>, vector<512x64xf32>, vector<16x64xf32> -> vector<16x64xf32>
    %c1032 = arith.constant 1032 : index
    %c0_9 = arith.constant 0 : index
    %29 = vector.load %arg1[%c1032, %c0_9] : memref<2184x128xf32, #tpu.memory_space<vmem>>, vector<1x64xf32>
    %30 = vector.broadcast %29 : vector<1x64xf32> to vector<16x64xf32>
    %31 = arith.addf %28, %30 : vector<16x64xf32>
    %cst_10 = arith.constant 0.000000e+00 : f32
    %32 = vector.broadcast %cst_10 : f32 to vector<16x64xf32>
    %33 = arith.maximumf %31, %32 : vector<16x64xf32>
    %34 = vector.extract_strided_slice %33 {offsets = [0, 0], sizes = [1, 64], strides = [1, 1]} : vector<16x64xf32> to vector<1x64xf32>
    %35 = vector.extract_strided_slice %33 {offsets = [1, 0], sizes = [1, 64], strides = [1, 1]} : vector<16x64xf32> to vector<1x64xf32>
    %36 = vector.extract_strided_slice %33 {offsets = [2, 0], sizes = [1, 64], strides = [1, 1]} : vector<16x64xf32> to vector<1x64xf32>
    %37 = vector.extract_strided_slice %33 {offsets = [3, 0], sizes = [1, 64], strides = [1, 1]} : vector<16x64xf32> to vector<1x64xf32>
    %38 = vector.extract_strided_slice %33 {offsets = [4, 0], sizes = [1, 64], strides = [1, 1]} : vector<16x64xf32> to vector<1x64xf32>
    %39 = vector.extract_strided_slice %33 {offsets = [5, 0], sizes = [1, 64], strides = [1, 1]} : vector<16x64xf32> to vector<1x64xf32>
    %40 = vector.extract_strided_slice %33 {offsets = [6, 0], sizes = [1, 64], strides = [1, 1]} : vector<16x64xf32> to vector<1x64xf32>
    %41 = vector.extract_strided_slice %33 {offsets = [7, 0], sizes = [1, 64], strides = [1, 1]} : vector<16x64xf32> to vector<1x64xf32>
    %42 = vector.extract_strided_slice %33 {offsets = [8, 0], sizes = [1, 64], strides = [1, 1]} : vector<16x64xf32> to vector<1x64xf32>
    %43 = vector.extract_strided_slice %33 {offsets = [9, 0], sizes = [1, 64], strides = [1, 1]} : vector<16x64xf32> to vector<1x64xf32>
    %44 = vector.extract_strided_slice %33 {offsets = [10, 0], sizes = [1, 64], strides = [1, 1]} : vector<16x64xf32> to vector<1x64xf32>
    %45 = vector.extract_strided_slice %33 {offsets = [11, 0], sizes = [1, 64], strides = [1, 1]} : vector<16x64xf32> to vector<1x64xf32>
    %46 = vector.extract_strided_slice %33 {offsets = [12, 0], sizes = [1, 64], strides = [1, 1]} : vector<16x64xf32> to vector<1x64xf32>
    %47 = vector.extract_strided_slice %33 {offsets = [13, 0], sizes = [1, 64], strides = [1, 1]} : vector<16x64xf32> to vector<1x64xf32>
    %48 = vector.extract_strided_slice %33 {offsets = [14, 0], sizes = [1, 64], strides = [1, 1]} : vector<16x64xf32> to vector<1x64xf32>
    %49 = vector.extract_strided_slice %33 {offsets = [15, 0], sizes = [1, 64], strides = [1, 1]} : vector<16x64xf32> to vector<1x64xf32>
    %50 = tpu.concatenate %34, %35, %36, %37, %38, %39, %40, %41, %42, %43, %44, %45, %46, %47, %48, %49 in 1 : vector<1x64xf32>, vector<1x64xf32>, vector<1x64xf32>, vector<1x64xf32>, vector<1x64xf32>, vector<1x64xf32>, vector<1x64xf32>, vector<1x64xf32>, vector<1x64xf32>, vector<1x64xf32>, vector<1x64xf32>, vector<1x64xf32>, vector<1x64xf32>, vector<1x64xf32>, vector<1x64xf32>, vector<1x64xf32> -> vector<1x1024xf32>
    %c1040 = arith.constant 1040 : index
    %c0_11 = arith.constant 0 : index
    %51 = vector.load %arg1[%c1040, %c0_11] : memref<2184x128xf32, #tpu.memory_space<vmem>>, vector<1024x64xf32>
    %cst_12 = arith.constant dense<0.000000e+00> : vector<1x64xf32>
    %52 = tpu.matmul %50, %51, %cst_12 {dimension_numbers = #tpu.dot_dimension_numbers<[1], [0], [0], [1], [0, 0, 1, 1], [], []>} : vector<1x1024xf32>, vector<1024x64xf32>, vector<1x64xf32> -> vector<1x64xf32>
    %c2064 = arith.constant 2064 : index
    %c0_13 = arith.constant 0 : index
    %53 = vector.load %arg1[%c2064, %c0_13] : memref<2184x128xf32, #tpu.memory_space<vmem>>, vector<1x64xf32>
    %54 = arith.addf %52, %53 : vector<1x64xf32>
    %cst_14 = arith.constant 0.000000e+00 : f32
    %55 = vector.broadcast %cst_14 : f32 to vector<1x64xf32>
    %56 = arith.maximumf %54, %55 : vector<1x64xf32>
    %c2072 = arith.constant 2072 : index
    %c0_15 = arith.constant 0 : index
    %57 = vector.load %arg1[%c2072, %c0_15] : memref<2184x128xf32, #tpu.memory_space<vmem>>, vector<64x32xf32>
    %cst_16 = arith.constant dense<0.000000e+00> : vector<1x32xf32>
    %58 = tpu.matmul %56, %57, %cst_16 {dimension_numbers = #tpu.dot_dimension_numbers<[1], [0], [0], [1], [0, 0, 1, 1], [], []>} : vector<1x64xf32>, vector<64x32xf32>, vector<1x32xf32> -> vector<1x32xf32>
    %c2136 = arith.constant 2136 : index
    %c0_17 = arith.constant 0 : index
    %59 = vector.load %arg1[%c2136, %c0_17] : memref<2184x128xf32, #tpu.memory_space<vmem>>, vector<1x32xf32>
    %60 = arith.addf %58, %59 : vector<1x32xf32>
    %cst_18 = arith.constant 0.000000e+00 : f32
    %61 = vector.broadcast %cst_18 : f32 to vector<1x32xf32>
    %62 = arith.maximumf %60, %61 : vector<1x32xf32>
    %c2144 = arith.constant 2144 : index
    %c0_19 = arith.constant 0 : index
    %63 = vector.load %arg1[%c2144, %c0_19] : memref<2184x128xf32, #tpu.memory_space<vmem>>, vector<32x5xf32>
    %cst_20 = arith.constant dense<0.000000e+00> : vector<1x5xf32>
    %64 = tpu.matmul %62, %63, %cst_20 {dimension_numbers = #tpu.dot_dimension_numbers<[1], [0], [0], [1], [0, 0, 1, 1], [], []>} : vector<1x32xf32>, vector<32x5xf32>, vector<1x5xf32> -> vector<1x5xf32>
    %c2176 = arith.constant 2176 : index
    %c0_21 = arith.constant 0 : index
    %65 = vector.load %arg1[%c2176, %c0_21] : memref<2184x128xf32, #tpu.memory_space<vmem>>, vector<1x5xf32>
    %66 = arith.addf %64, %65 : vector<1x5xf32>
    %67 = vector.extract_strided_slice %66 {offsets = [0, 0], sizes = [1, 4], strides = [1, 1]} : vector<1x5xf32> to vector<1x4xf32>
    %cst_22 = arith.constant dense<0xFF800000> : vector<1xf32>
    %68 = vector.multi_reduction <maximumf>, %67, %cst_22 [1] : vector<1x4xf32> to vector<1xf32>
    %69 = vector.shape_cast %68 : vector<1xf32> to vector<1x1xf32>
    %70 = vector.broadcast %69 : vector<1x1xf32> to vector<1x4xf32>
    %71 = arith.subf %67, %70 : vector<1x4xf32>
    %72 = math.exp %71 : vector<1x4xf32>
    %cst_23 = arith.constant dense<0.000000e+00> : vector<1xf32>
    %73 = vector.multi_reduction <add>, %72, %cst_23 [1] : vector<1x4xf32> to vector<1xf32>
    %74 = vector.shape_cast %73 : vector<1xf32> to vector<1x1xf32>
    %75 = vector.broadcast %74 : vector<1x1xf32> to vector<1x4xf32>
    %76 = arith.divf %72, %75 : vector<1x4xf32>
    %77 = vector.extract_strided_slice %66 {offsets = [0, 4], sizes = [1, 1], strides = [1, 1]} : vector<1x5xf32> to vector<1x1xf32>
    %78 = tpu.concatenate %76, %77 in 1 : vector<1x4xf32>, vector<1x1xf32> -> vector<1x5xf32>
    %c0_24 = arith.constant 0 : index
    %c0_25 = arith.constant 0 : index
    %79 = vector.load %arg2[%c0_24, %c0_25] : memref<1x5xf32, #tpu.memory_space<vmem>>, vector<1x5xf32>
    tpu.vector_store %arg2[%c0_24, %c0_25], %78 {strides = array<i32>} : memref<1x5xf32, #tpu.memory_space<vmem>>, vector<1x5xf32>,
    return
  }
}

</mosaic_0001>

<llo_original>
// kernel: cnn_ac_forward.1
$region0: #{cnn_ac_forward.1}
  #allocation0 [shape = 'u32[]', space=smem, size = 0x4, offset = 0x4, fixed_abs, tag = 'smem constant byte address 0x4 - core index']
  #allocation1 [shape = 'u32[72,128]{1,0:T(1,128)}', space=vmem, size = 0x9000, scoped, tag = 'internal scratch']
  %s0 = inlined_call_operand.vmem [shape: f32[128,256], index: 0, kind: input, shape index: {}]
  %s1 = inlined_call_operand.vmem [shape: f32[2184,128], index: 1, kind: input, shape index: {}]
  %s2 = inlined_call_operand.vmem [shape: f32[1,5], index: 2, kind: output, shape index: {}]
  %s3 = sld [smem:[#allocation0]]
  $region18: #{cnn_ac_forward.1} parent=0
    _
  %s5 = ssub.s32 1, %s3
  %s6 = scalar_select 0, %s5, %s3
  // Predicated region
  $region2: #{cnn_ac_forward.1} parent=0 // pred_check
    _
  $region3: #{cnn_ac_forward.1} parent=0 // pred_check_branch
    %8 = sbr.rel (0) target = $region5
  $region4: #{cnn_ac_forward.1} parent=0 // pred_region
    _
  $region5: #{cnn_ac_forward.1} parent=0 // pred_fallthru
    _
  // Predicated region
  $region6: #{cnn_ac_forward.1} parent=0 // pred_check
    _
  $region7: #{cnn_ac_forward.1} parent=0 // pred_check_branch
    %10 = sbr.rel (0) target = $region9
  $region8: #{cnn_ac_forward.1} parent=0 // pred_region
    _
  $region9: #{cnn_ac_forward.1} parent=0 // pred_fallthru
    _
  %v11 = vld [vmem:[%s0] sm:$0xff]
  %v12 = vld [vmem:[%s0 + $0x8] sm:$0xff]
  %v13 = vld [vmem:[%s0 + $0x10] sm:$0xff]
  %v14 = vld [vmem:[%s0 + $0x18] sm:$0xff]
  %v15 = vld [vmem:[%s0 + $0x20] sm:$0xff]
  %v16 = vld [vmem:[%s0 + $0x28] sm:$0xff]
  %v17 = vld [vmem:[%s0 + $0x30] sm:$0xff]
  %v18 = vld [vmem:[%s0 + $0x38] sm:$0xff]
  %v19 = vld [vmem:[%s0 + $0x40] sm:$0xff]
  %v20 = vld [vmem:[%s0 + $0x48] sm:$0xff]
  %v21 = vld [vmem:[%s0 + $0x50] sm:$0xff]
  %v22 = vld [vmem:[%s0 + $0x58] sm:$0xff]
  %v23 = vld [vmem:[%s0 + $0x60] sm:$0xff]
  %v24 = vld [vmem:[%s0 + $0x68] sm:$0xff]
  %v25 = vld [vmem:[%s0 + $0x70] sm:$0xff]
  %v26 = vld [vmem:[%s0 + $0x78] sm:$0xff]
  %v27 = vld [vmem:[%s0 + $0x80] sm:$0xff]
  %v28 = vld [vmem:[%s0 + $0x88] sm:$0xff]
  %v29 = vld [vmem:[%s0 + $0x90] sm:$0xff]
  %v30 = vld [vmem:[%s0 + $0x98] sm:$0xff]
  %v31 = vld [vmem:[%s0 + $0xa0] sm:$0xff]
  %v32 = vld [vmem:[%s0 + $0xa8] sm:$0xff]
  %v33 = vld [vmem:[%s0 + $0xb0] sm:$0xff]
  %v34 = vld [vmem:[%s0 + $0xb8] sm:$0xff]
  %v35 = vld [vmem:[%s0 + $0xc0] sm:$0xff]
  %v36 = vld [vmem:[%s0 + $0xc8] sm:$0xff]
  %v37 = vld [vmem:[%s0 + $0xd0] sm:$0xff]
  %v38 = vld [vmem:[%s0 + $0xd8] sm:$0xff]
  %v39 = vld [vmem:[%s0 + $0xe0] sm:$0xff]
  %v40 = vld [vmem:[%s0 + $0xe8] sm:$0xff]
  %v41 = vld [vmem:[%s0 + $0xf0] sm:$0xff]
  %v42 = vld [vmem:[%s0 + $0xf8] sm:$0xff]
  %v43 = vld [vmem:[%s1] sm:$0xff]
  %v44 = vld [vmem:[%s1 + $0x8] sm:$0xff]
  %v45 = vld [vmem:[%s1 + $0x10] sm:$0xff]
  %v46 = vld [vmem:[%s1 + $0x18] sm:$0xff]
  %v47 = vld [vmem:[%s1 + $0x20] sm:$0xff]
  %v48 = vld [vmem:[%s1 + $0x28] sm:$0xff]
  %v49 = vld [vmem:[%s1 + $0x30] sm:$0xff]
  %v50 = vld [vmem:[%s1 + $0x38] sm:$0xff]
  %v51 = vld [vmem:[%s1 + $0x40] sm:$0xff]
  %v52 = vld [vmem:[%s1 + $0x48] sm:$0xff]
  %v53 = vld [vmem:[%s1 + $0x50] sm:$0xff]
  %v54 = vld [vmem:[%s1 + $0x58] sm:$0xff]
  %v55 = vld [vmem:[%s1 + $0x60] sm:$0xff]
  %v56 = vld [vmem:[%s1 + $0x68] sm:$0xff]
  %v57 = vld [vmem:[%s1 + $0x70] sm:$0xff]
  %v58 = vld [vmem:[%s1 + $0x78] sm:$0xff]
  %v59 = vld [vmem:[%s1 + $0x80] sm:$0xff]
  %v60 = vld [vmem:[%s1 + $0x88] sm:$0xff]
  %v61 = vld [vmem:[%s1 + $0x90] sm:$0xff]
  %v62 = vld [vmem:[%s1 + $0x98] sm:$0xff]
  %v63 = vld [vmem:[%s1 + $0xa0] sm:$0xff]
  %v64 = vld [vmem:[%s1 + $0xa8] sm:$0xff]
  %v65 = vld [vmem:[%s1 + $0xb0] sm:$0xff]
  %v66 = vld [vmem:[%s1 + $0xb8] sm:$0xff]
  %v67 = vld [vmem:[%s1 + $0xc0] sm:$0xff]
  %v68 = vld [vmem:[%s1 + $0xc8] sm:$0xff]
  %v69 = vld [vmem:[%s1 + $0xd0] sm:$0xff]
  %v70 = vld [vmem:[%s1 + $0xd8] sm:$0xff]
  %v71 = vld [vmem:[%s1 + $0xe0] sm:$0xff]
  %v72 = vld [vmem:[%s1 + $0xe8] sm:$0xff]
  %v73 = vld [vmem:[%s1 + $0xf0] sm:$0xff]
  %v74 = vld [vmem:[%s1 + $0xf8] sm:$0xff]
  %v75 = vld [vmem:[%s1 + $0x100] sm:$0x1]
  %v76 = vperm.slane %v75, 0
  %77 = vmatpush.msra.mxu0 %v58
  %78 = vmatpush.msra.mxu0 %v57
  %79 = vmatpush.msra.mxu0 %v56
  %80 = vmatpush.msra.mxu0 %v55
  %81 = vmatpush.msra.mxu0 %v54
  %82 = vmatpush.msra.mxu0 %v53
  %83 = vmatpush.msra.mxu0 %v52
  %84 = vmatpush.msra.mxu0 %v51
  %85 = vmatpush.msra.mxu0 %v50
  %86 = vmatpush.msra.mxu0 %v49
  %87 = vmatpush.msra.mxu0 %v48
  %88 = vmatpush.msra.mxu0 %v47
  %89 = vmatpush.msra.mxu0 %v46
  %90 = vmatpush.msra.mxu0 %v45
  %91 = vmatpush.msra.mxu0 %v44
  %92 = vmatpush.msra.mxu0 %v43
  %93 = vmatmul.f32.gmra.mxu0 %v11
  %v94 = vpop.f32.mrf.mxu0
  %v95 = vadd.f32 %v76, %v94
  %96 = vmatmul.f32.gmra.mxu0 %v13
  %v97 = vpop.f32.mrf.mxu0
  %v98 = vadd.f32 %v76, %v97
  %99 = vmatmul.f32.gmra.mxu0 %v15
  %v100 = vpop.f32.mrf.mxu0
  %v101 = vadd.f32 %v76, %v100
  %102 = vmatmul.f32.gmra.mxu0 %v17
  %v103 = vpop.f32.mrf.mxu0
  %v104 = vadd.f32 %v76, %v103
  %105 = vmatmul.f32.gmra.mxu0 %v19
  %v106 = vpop.f32.mrf.mxu0
  %v107 = vadd.f32 %v76, %v106
  %108 = vmatmul.f32.gmra.mxu0 %v21
  %v109 = vpop.f32.mrf.mxu0
  %v110 = vadd.f32 %v76, %v109
  %111 = vmatmul.f32.gmra.mxu0 %v23
  %v112 = vpop.f32.mrf.mxu0
  %v113 = vadd.f32 %v76, %v112
  %114 = vmatmul.f32.gmra.mxu0 %v25
  %v115 = vpop.f32.mrf.mxu0
  %v116 = vadd.f32 %v76, %v115
  %117 = vmatmul.f32.gmra.mxu0 %v27
  %v118 = vpop.f32.mrf.mxu0
  %v119 = vadd.f32 %v76, %v118
  %120 = vmatmul.f32.gmra.mxu0 %v29
  %v121 = vpop.f32.mrf.mxu0
  %v122 = vadd.f32 %v76, %v121
  %123 = vmatmul.f32.gmra.mxu0 %v31
  %v124 = vpop.f32.mrf.mxu0
  %v125 = vadd.f32 %v76, %v124
  %126 = vmatmul.f32.gmra.mxu0 %v33
  %v127 = vpop.f32.mrf.mxu0
  %v128 = vadd.f32 %v76, %v127
  %129 = vmatmul.f32.gmra.mxu0 %v35
  %v130 = vpop.f32.mrf.mxu0
  %v131 = vadd.f32 %v76, %v130
  %132 = vmatmul.f32.gmra.mxu0 %v37
  %v133 = vpop.f32.mrf.mxu0
  %v134 = vadd.f32 %v76, %v133
  %135 = vmatmul.f32.gmra.mxu0 %v39
  %v136 = vpop.f32.mrf.mxu0
  %v137 = vadd.f32 %v76, %v136
  %138 = vmatmul.f32.gmra.mxu0 %v41
  %v139 = vpop.f32.mrf.mxu0
  %v140 = vadd.f32 %v76, %v139
  %141 = vdwg.mxu0
  %142 = vmatpush.msra.mxu0 %v74
  %143 = vmatpush.msra.mxu0 %v73
  %144 = vmatpush.msra.mxu0 %v72
  %145 = vmatpush.msra.mxu0 %v71
  %146 = vmatpush.msra.mxu0 %v70
  %147 = vmatpush.msra.mxu0 %v69
  %148 = vmatpush.msra.mxu0 %v68
  %149 = vmatpush.msra.mxu0 %v67
  %150 = vmatpush.msra.mxu0 %v66
  %151 = vmatpush.msra.mxu0 %v65
  %152 = vmatpush.msra.mxu0 %v64
  %153 = vmatpush.msra.mxu0 %v63
  %154 = vmatpush.msra.mxu0 %v62
  %155 = vmatpush.msra.mxu0 %v61
  %156 = vmatpush.msra.mxu0 %v60
  %157 = vmatpush.msra.mxu0 %v59
  %158 = vmatmul.f32.gmra.mxu0 %v12
  %v159 = vpop.f32.mrf.mxu0
  %v160 = vadd.f32 %v95, %v159
  %161 = vmatmul.f32.gmra.mxu0 %v14
  %v162 = vpop.f32.mrf.mxu0
  %v163 = vadd.f32 %v98, %v162
  %164 = vmatmul.f32.gmra.mxu0 %v16
  %v165 = vpop.f32.mrf.mxu0
  %v166 = vadd.f32 %v101, %v165
  %167 = vmatmul.f32.gmra.mxu0 %v18
  %v168 = vpop.f32.mrf.mxu0
  %v169 = vadd.f32 %v104, %v168
  %170 = vmatmul.f32.gmra.mxu0 %v20
  %v171 = vpop.f32.mrf.mxu0
  %v172 = vadd.f32 %v107, %v171
  %173 = vmatmul.f32.gmra.mxu0 %v22
  %v174 = vpop.f32.mrf.mxu0
  %v175 = vadd.f32 %v110, %v174
  %176 = vmatmul.f32.gmra.mxu0 %v24
  %v177 = vpop.f32.mrf.mxu0
  %v178 = vadd.f32 %v113, %v177
  %179 = vmatmul.f32.gmra.mxu0 %v26
  %v180 = vpop.f32.mrf.mxu0
  %v181 = vadd.f32 %v116, %v180
  %182 = vmatmul.f32.gmra.mxu0 %v28
  %v183 = vpop.f32.mrf.mxu0
  %v184 = vadd.f32 %v119, %v183
  %185 = vmatmul.f32.gmra.mxu0 %v30
  %v186 = vpop.f32.mrf.mxu0
  %v187 = vadd.f32 %v122, %v186
  %188 = vmatmul.f32.gmra.mxu0 %v32
  %v189 = vpop.f32.mrf.mxu0
  %v190 = vadd.f32 %v125, %v189
  %191 = vmatmul.f32.gmra.mxu0 %v34
  %v192 = vpop.f32.mrf.mxu0
  %v193 = vadd.f32 %v128, %v192
  %194 = vmatmul.f32.gmra.mxu0 %v36
  %v195 = vpop.f32.mrf.mxu0
  %v196 = vadd.f32 %v131, %v195
  %197 = vmatmul.f32.gmra.mxu0 %v38
  %v198 = vpop.f32.mrf.mxu0
  %v199 = vadd.f32 %v134, %v198
  %200 = vmatmul.f32.gmra.mxu0 %v40
  %v201 = vpop.f32.mrf.mxu0
  %v202 = vadd.f32 %v137, %v201
  %203 = vmatmul.f32.gmra.mxu0 %v42
  %v204 = vpop.f32.mrf.mxu0
  %v205 = vadd.f32 %v140, %v204
  %206 = vdwg.mxu0
  %v207 = vmax.f32 %v160, 0.0
  %v208 = vmax.f32 %v163, 0.0
  %v209 = vmax.f32 %v166, 0.0
  %v210 = vmax.f32 %v169, 0.0
  %v211 = vmax.f32 %v172, 0.0
  %v212 = vmax.f32 %v175, 0.0
  %v213 = vmax.f32 %v178, 0.0
  %v214 = vmax.f32 %v181, 0.0
  %v215 = vmax.f32 %v184, 0.0
  %v216 = vmax.f32 %v187, 0.0
  %v217 = vmax.f32 %v190, 0.0
  %v218 = vmax.f32 %v193, 0.0
  %v219 = vmax.f32 %v196, 0.0
  %v220 = vmax.f32 %v199, 0.0
  %v221 = vmax.f32 %v202, 0.0
  %v222 = vmax.f32 %v205, 0.0
  %v223 = vld [vmem:[%s1 + $0x108] sm:$0xff]
  %v224 = vld [vmem:[%s1 + $0x110] sm:$0xff]
  %v225 = vld [vmem:[%s1 + $0x118] sm:$0xff]
  %v226 = vld [vmem:[%s1 + $0x120] sm:$0xff]
  %v227 = vld [vmem:[%s1 + $0x128] sm:$0xff]
  %v228 = vld [vmem:[%s1 + $0x130] sm:$0xff]
  %v229 = vld [vmem:[%s1 + $0x138] sm:$0xff]
  %v230 = vld [vmem:[%s1 + $0x140] sm:$0xff]
  %v231 = vld [vmem:[%s1 + $0x148] sm:$0xff]
  %v232 = vld [vmem:[%s1 + $0x150] sm:$0xff]
  %v233 = vld [vmem:[%s1 + $0x158] sm:$0xff]
  %v234 = vld [vmem:[%s1 + $0x160] sm:$0xff]
  %v235 = vld [vmem:[%s1 + $0x168] sm:$0xff]
  %v236 = vld [vmem:[%s1 + $0x170] sm:$0xff]
  %v237 = vld [vmem:[%s1 + $0x178] sm:$0xff]
  %v238 = vld [vmem:[%s1 + $0x180] sm:$0xff]
  %v239 = vld [vmem:[%s1 + $0x188] sm:$0xff]
  %v240 = vld [vmem:[%s1 + $0x190] sm:$0xff]
  %v241 = vld [vmem:[%s1 + $0x198] sm:$0xff]
  %v242 = vld [vmem:[%s1 + $0x1a0] sm:$0xff]
  %v243 = vld [vmem:[%s1 + $0x1a8] sm:$0xff]
  %v244 = vld [vmem:[%s1 + $0x1b0] sm:$0xff]
  %v245 = vld [vmem:[%s1 + $0x1b8] sm:$0xff]
  %v246 = vld [vmem:[%s1 + $0x1c0] sm:$0xff]
  %v247 = vld [vmem:[%s1 + $0x1c8] sm:$0xff]
  %v248 = vld [vmem:[%s1 + $0x1d0] sm:$0xff]
  %v249 = vld [vmem:[%s1 + $0x1d8] sm:$0xff]
  %v250 = vld [vmem:[%s1 + $0x1e0] sm:$0xff]
  %v251 = vld [vmem:[%s1 + $0x1e8] sm:$0xff]
  %v252 = vld [vmem:[%s1 + $0x1f0] sm:$0xff]
  %v253 = vld [vmem:[%s1 + $0x1f8] sm:$0xff]
  %v254 = vld [vmem:[%s1 + $0x200] sm:$0xff]
  %255 = vmatpush.msra.mxu0 %v222
  %256 = vmatpush.msra.mxu0 %v221
  %257 = vmatpush.msra.mxu0 %v220
  %258 = vmatpush.msra.mxu0 %v219
  %259 = vmatpush.msra.mxu0 %v218
  %260 = vmatpush.msra.mxu0 %v217
  %261 = vmatpush.msra.mxu0 %v216
  %262 = vmatpush.msra.mxu0 %v215
  %263 = vmatpush.msra.mxu0 %v214
  %264 = vmatpush.msra.mxu0 %v213
  %265 = vmatpush.msra.mxu0 %v212
  %266 = vmatpush.msra.mxu0 %v211
  %267 = vmatpush.msra.mxu0 %v210
  %268 = vmatpush.msra.mxu0 %v209
  %269 = vmatpush.msra.mxu0 %v208
  %270 = vmatpush.msra.mxu0 %v207
  %271 = vmatmul.f32.gmra.mxu0 %v223
  %v272 = vpop.f32.mrf.mxu0
  %v273 = vadd.f32 0.0, %v272
  %274 = vmatmul.f32.gmra.mxu0 %v224
  %v275 = vpop.f32.mrf.mxu0
  %v276 = vadd.f32 0.0, %v275
  %277 = vmatmul.f32.gmra.mxu0 %v225
  %v278 = vpop.f32.mrf.mxu0
  %v279 = vadd.f32 0.0, %v278
  %280 = vmatmul.f32.gmra.mxu0 %v226
  %v281 = vpop.f32.mrf.mxu0
  %v282 = vadd.f32 0.0, %v281
  %283 = vmatmul.f32.gmra.mxu0 %v227
  %v284 = vpop.f32.mrf.mxu0
  %v285 = vadd.f32 0.0, %v284
  %286 = vmatmul.f32.gmra.mxu0 %v228
  %v287 = vpop.f32.mrf.mxu0
  %v288 = vadd.f32 0.0, %v287
  %289 = vmatmul.f32.gmra.mxu0 %v229
  %v290 = vpop.f32.mrf.mxu0
  %v291 = vadd.f32 0.0, %v290
  %292 = vmatmul.f32.gmra.mxu0 %v230
  %v293 = vpop.f32.mrf.mxu0
  %v294 = vadd.f32 0.0, %v293
  %295 = vmatmul.f32.gmra.mxu0 %v231
  %v296 = vpop.f32.mrf.mxu0
  %v297 = vadd.f32 0.0, %v296
  %298 = vmatmul.f32.gmra.mxu0 %v232
  %v299 = vpop.f32.mrf.mxu0
  %v300 = vadd.f32 0.0, %v299
  %301 = vmatmul.f32.gmra.mxu0 %v233
  %v302 = vpop.f32.mrf.mxu0
  %v303 = vadd.f32 0.0, %v302
  %304 = vmatmul.f32.gmra.mxu0 %v234
  %v305 = vpop.f32.mrf.mxu0
  %v306 = vadd.f32 0.0, %v305
  %307 = vmatmul.f32.gmra.mxu0 %v235
  %v308 = vpop.f32.mrf.mxu0
  %v309 = vadd.f32 0.0, %v308
  %310 = vmatmul.f32.gmra.mxu0 %v236
  %v311 = vpop.f32.mrf.mxu0
  %v312 = vadd.f32 0.0, %v311
  %313 = vmatmul.f32.gmra.mxu0 %v237
  %v314 = vpop.f32.mrf.mxu0
  %v315 = vadd.f32 0.0, %v314
  %316 = vmatmul.f32.gmra.mxu0 %v238
  %v317 = vpop.f32.mrf.mxu0
  %v318 = vadd.f32 0.0, %v317
  %319 = vmatmul.f32.gmra.mxu0 %v239
  %v320 = vpop.f32.mrf.mxu0
  %v321 = vadd.f32 0.0, %v320
  %322 = vmatmul.f32.gmra.mxu0 %v240
  %v323 = vpop.f32.mrf.mxu0
  %v324 = vadd.f32 0.0, %v323
  %325 = vmatmul.f32.gmra.mxu0 %v241
  %v326 = vpop.f32.mrf.mxu0
  %v327 = vadd.f32 0.0, %v326
  %328 = vmatmul.f32.gmra.mxu0 %v242
  %v329 = vpop.f32.mrf.mxu0
  %v330 = vadd.f32 0.0, %v329
  %331 = vmatmul.f32.gmra.mxu0 %v243
  %v332 = vpop.f32.mrf.mxu0
  %v333 = vadd.f32 0.0, %v332
  %334 = vmatmul.f32.gmra.mxu0 %v244
  %v335 = vpop.f32.mrf.mxu0
  %v336 = vadd.f32 0.0, %v335
  %337 = vmatmul.f32.gmra.mxu0 %v245
  %v338 = vpop.f32.mrf.mxu0
  %v339 = vadd.f32 0.0, %v338
  %340 = vmatmul.f32.gmra.mxu0 %v246
  %v341 = vpop.f32.mrf.mxu0
  %v342 = vadd.f32 0.0, %v341
  %343 = vmatmul.f32.gmra.mxu0 %v247
  %v344 = vpop.f32.mrf.mxu0
  %v345 = vadd.f32 0.0, %v344
  %346 = vmatmul.f32.gmra.mxu0 %v248
  %v347 = vpop.f32.mrf.mxu0
  %v348 = vadd.f32 0.0, %v347
  %349 = vmatmul.f32.gmra.mxu0 %v249
  %v350 = vpop.f32.mrf.mxu0
  %v351 = vadd.f32 0.0, %v350
  %352 = vmatmul.f32.gmra.mxu0 %v250
  %v353 = vpop.f32.mrf.mxu0
  %v354 = vadd.f32 0.0, %v353
  %355 = vmatmul.f32.gmra.mxu0 %v251
  %v356 = vpop.f32.mrf.mxu0
  %v357 = vadd.f32 0.0, %v356
  %358 = vmatmul.f32.gmra.mxu0 %v252
  %v359 = vpop.f32.mrf.mxu0
  %v360 = vadd.f32 0.0, %v359
  %361 = vmatmul.f32.gmra.mxu0 %v253
  %v362 = vpop.f32.mrf.mxu0
  %v363 = vadd.f32 0.0, %v362
  %364 = vmatmul.f32.gmra.mxu0 %v254
  %v365 = vpop.f32.mrf.mxu0
  %v366 = vadd.f32 0.0, %v365
  %367 = vdwg.mxu0
  %370 = vrot.lane.b32.xlu0 %v279, 32
  %v371 = vpop.permute.xlu0 %370
  %372 = vrot.lane.b32.xlu0 %v282, 32
  %v373 = vpop.permute.xlu0 %372
  %378 = vrot.lane.b32.xlu0 %v285, 64
  %v379 = vpop.permute.xlu0 %378
  %380 = vrot.lane.b32.xlu0 %v288, 64
  %v381 = vpop.permute.xlu0 %380
  %386 = vrot.lane.b32.xlu0 %v291, 96
  %v387 = vpop.permute.xlu0 %386
  %388 = vrot.lane.b32.xlu0 %v294, 96
  %v389 = vpop.permute.xlu0 %388
  %394 = vrot.lane.b32.xlu0 %v303, 32
  %v395 = vpop.permute.xlu0 %394
  %396 = vrot.lane.b32.xlu0 %v306, 32
  %v397 = vpop.permute.xlu0 %396
  %402 = vrot.lane.b32.xlu0 %v309, 64
  %v403 = vpop.permute.xlu0 %402
  %404 = vrot.lane.b32.xlu0 %v312, 64
  %v405 = vpop.permute.xlu0 %404
  %410 = vrot.lane.b32.xlu0 %v315, 96
  %v411 = vpop.permute.xlu0 %410
  %412 = vrot.lane.b32.xlu0 %v318, 96
  %v413 = vpop.permute.xlu0 %412
  %418 = vrot.lane.b32.xlu0 %v327, 32
  %v419 = vpop.permute.xlu0 %418
  %420 = vrot.lane.b32.xlu0 %v330, 32
  %v421 = vpop.permute.xlu0 %420
  %426 = vrot.lane.b32.xlu0 %v333, 64
  %v427 = vpop.permute.xlu0 %426
  %428 = vrot.lane.b32.xlu0 %v336, 64
  %v429 = vpop.permute.xlu0 %428
  %434 = vrot.lane.b32.xlu0 %v339, 96
  %v435 = vpop.permute.xlu0 %434
  %436 = vrot.lane.b32.xlu0 %v342, 96
  %v437 = vpop.permute.xlu0 %436
  %442 = vrot.lane.b32.xlu0 %v351, 32
  %v443 = vpop.permute.xlu0 %442
  %444 = vrot.lane.b32.xlu0 %v354, 32
  %v445 = vpop.permute.xlu0 %444
  %450 = vrot.lane.b32.xlu0 %v357, 64
  %v451 = vpop.permute.xlu0 %450
  %452 = vrot.lane.b32.xlu0 %v360, 64
  %v453 = vpop.permute.xlu0 %452
  %458 = vrot.lane.b32.xlu0 %v363, 96
  %v459 = vpop.permute.xlu0 %458
  %460 = vrot.lane.b32.xlu0 %v366, 96
  %v461 = vpop.permute.xlu0 %460
  %vm464 = vcmask 261120
  %v465 = vsel %vm464, %v273, %v371
  %v466 = vsel %vm464, %v276, %v373
  %vm467 = vcmask 523264
  %v468 = vsel %vm467, %v465, %v379
  %v469 = vsel %vm467, %v466, %v381
  %vm470 = vcmask 785408
  %v471 = vsel %vm470, %v468, %v387
  %v472 = vsel %vm470, %v469, %v389
  %v473 = vsel %vm464, %v297, %v395
  %v474 = vsel %vm464, %v300, %v397
  %v475 = vsel %vm467, %v473, %v403
  %v476 = vsel %vm467, %v474, %v405
  %v477 = vsel %vm470, %v475, %v411
  %v478 = vsel %vm470, %v476, %v413
  %v479 = vsel %vm464, %v321, %v419
  %v480 = vsel %vm464, %v324, %v421
  %v481 = vsel %vm467, %v479, %v427
  %v482 = vsel %vm467, %v480, %v429
  %v483 = vsel %vm470, %v481, %v435
  %v484 = vsel %vm470, %v482, %v437
  %v485 = vsel %vm464, %v345, %v443
  %v486 = vsel %vm464, %v348, %v445
  %v487 = vsel %vm467, %v485, %v451
  %v488 = vsel %vm467, %v486, %v453
  %v489 = vsel %vm470, %v487, %v459
  %v490 = vsel %vm470, %v488, %v461
  %v491 = vld [vmem:[%s1 + $0x208] sm:$0xff]
  %v492 = vld [vmem:[%s1 + $0x210] sm:$0xff]
  %v493 = vld [vmem:[%s1 + $0x218] sm:$0xff]
  %v494 = vld [vmem:[%s1 + $0x220] sm:$0xff]
  %v495 = vld [vmem:[%s1 + $0x228] sm:$0xff]
  %v496 = vld [vmem:[%s1 + $0x230] sm:$0xff]
  %v497 = vld [vmem:[%s1 + $0x238] sm:$0xff]
  %v498 = vld [vmem:[%s1 + $0x240] sm:$0xff]
  %v499 = vld [vmem:[%s1 + $0x248] sm:$0xff]
  %v500 = vld [vmem:[%s1 + $0x250] sm:$0xff]
  %v501 = vld [vmem:[%s1 + $0x258] sm:$0xff]
  %v502 = vld [vmem:[%s1 + $0x260] sm:$0xff]
  %v503 = vld [vmem:[%s1 + $0x268] sm:$0xff]
  %v504 = vld [vmem:[%s1 + $0x270] sm:$0xff]
  %v505 = vld [vmem:[%s1 + $0x278] sm:$0xff]
  %v506 = vld [vmem:[%s1 + $0x280] sm:$0xff]
  %v507 = vld [vmem:[%s1 + $0x288] sm:$0xff]
  %v508 = vld [vmem:[%s1 + $0x290] sm:$0xff]
  %v509 = vld [vmem:[%s1 + $0x298] sm:$0xff]
  %v510 = vld [vmem:[%s1 + $0x2a0] sm:$0xff]
  %v511 = vld [vmem:[%s1 + $0x2a8] sm:$0xff]
  %v512 = vld [vmem:[%s1 + $0x2b0] sm:$0xff]
  %v513 = vld [vmem:[%s1 + $0x2b8] sm:$0xff]
  %v514 = vld [vmem:[%s1 + $0x2c0] sm:$0xff]
  %v515 = vld [vmem:[%s1 + $0x2c8] sm:$0xff]
  %v516 = vld [vmem:[%s1 + $0x2d0] sm:$0xff]
  %v517 = vld [vmem:[%s1 + $0x2d8] sm:$0xff]
  %v518 = vld [vmem:[%s1 + $0x2e0] sm:$0xff]
  %v519 = vld [vmem:[%s1 + $0x2e8] sm:$0xff]
  %v520 = vld [vmem:[%s1 + $0x2f0] sm:$0xff]
  %v521 = vld [vmem:[%s1 + $0x2f8] sm:$0xff]
  %v522 = vld [vmem:[%s1 + $0x300] sm:$0xff]
  %v523 = vld [vmem:[%s1 + $0x308] sm:$0xff]
  %v524 = vld [vmem:[%s1 + $0x310] sm:$0xff]
  %v525 = vld [vmem:[%s1 + $0x318] sm:$0xff]
  %v526 = vld [vmem:[%s1 + $0x320] sm:$0xff]
  %v527 = vld [vmem:[%s1 + $0x328] sm:$0xff]
  %v528 = vld [vmem:[%s1 + $0x330] sm:$0xff]
  %v529 = vld [vmem:[%s1 + $0x338] sm:$0xff]
  %v530 = vld [vmem:[%s1 + $0x340] sm:$0xff]
  %v531 = vld [vmem:[%s1 + $0x348] sm:$0xff]
  %v532 = vld [vmem:[%s1 + $0x350] sm:$0xff]
  %v533 = vld [vmem:[%s1 + $0x358] sm:$0xff]
  %v534 = vld [vmem:[%s1 + $0x360] sm:$0xff]
  %v535 = vld [vmem:[%s1 + $0x368] sm:$0xff]
  %v536 = vld [vmem:[%s1 + $0x370] sm:$0xff]
  %v537 = vld [vmem:[%s1 + $0x378] sm:$0xff]
  %v538 = vld [vmem:[%s1 + $0x380] sm:$0xff]
  %v539 = vld [vmem:[%s1 + $0x388] sm:$0xff]
  %v540 = vld [vmem:[%s1 + $0x390] sm:$0xff]
  %v541 = vld [vmem:[%s1 + $0x398] sm:$0xff]
  %v542 = vld [vmem:[%s1 + $0x3a0] sm:$0xff]
  %v543 = vld [vmem:[%s1 + $0x3a8] sm:$0xff]
  %v544 = vld [vmem:[%s1 + $0x3b0] sm:$0xff]
  %v545 = vld [vmem:[%s1 + $0x3b8] sm:$0xff]
  %v546 = vld [vmem:[%s1 + $0x3c0] sm:$0xff]
  %v547 = vld [vmem:[%s1 + $0x3c8] sm:$0xff]
  %v548 = vld [vmem:[%s1 + $0x3d0] sm:$0xff]
  %v549 = vld [vmem:[%s1 + $0x3d8] sm:$0xff]
  %v550 = vld [vmem:[%s1 + $0x3e0] sm:$0xff]
  %v551 = vld [vmem:[%s1 + $0x3e8] sm:$0xff]
  %v552 = vld [vmem:[%s1 + $0x3f0] sm:$0xff]
  %v553 = vld [vmem:[%s1 + $0x3f8] sm:$0xff]
  %v554 = vld [vmem:[%s1 + $0x400] sm:$0xff]
  %v555 = vld [vmem:[%s1 + $0x408] sm:$0x1]
  %v556 = vperm.slane %v555, 0
  %557 = vmatpush.msra.mxu0 %v506
  %558 = vmatpush.msra.mxu0 %v505
  %559 = vmatpush.msra.mxu0 %v504
  %560 = vmatpush.msra.mxu0 %v503
  %561 = vmatpush.msra.mxu0 %v502
  %562 = vmatpush.msra.mxu0 %v501
  %563 = vmatpush.msra.mxu0 %v500
  %564 = vmatpush.msra.mxu0 %v499
  %565 = vmatpush.msra.mxu0 %v498
  %566 = vmatpush.msra.mxu0 %v497
  %567 = vmatpush.msra.mxu0 %v496
  %568 = vmatpush.msra.mxu0 %v495
  %569 = vmatpush.msra.mxu0 %v494
  %570 = vmatpush.msra.mxu0 %v493
  %571 = vmatpush.msra.mxu0 %v492
  %572 = vmatpush.msra.mxu0 %v491
  %573 = vmatmul.f32.gmra.mxu0 %v471
  %v574 = vpop.f32.mrf.mxu0
  %v575 = vadd.f32 %v556, %v574
  %576 = vmatmul.f32.gmra.mxu0 %v472
  %v577 = vpop.f32.mrf.mxu0
  %v578 = vadd.f32 %v556, %v577
  %579 = vdwg.mxu0
  %580 = vmatpush.msra.mxu0 %v522
  %581 = vmatpush.msra.mxu0 %v521
  %582 = vmatpush.msra.mxu0 %v520
  %583 = vmatpush.msra.mxu0 %v519
  %584 = vmatpush.msra.mxu0 %v518
  %585 = vmatpush.msra.mxu0 %v517
  %586 = vmatpush.msra.mxu0 %v516
  %587 = vmatpush.msra.mxu0 %v515
  %588 = vmatpush.msra.mxu0 %v514
  %589 = vmatpush.msra.mxu0 %v513
  %590 = vmatpush.msra.mxu0 %v512
  %591 = vmatpush.msra.mxu0 %v511
  %592 = vmatpush.msra.mxu0 %v510
  %593 = vmatpush.msra.mxu0 %v509
  %594 = vmatpush.msra.mxu0 %v508
  %595 = vmatpush.msra.mxu0 %v507
  %596 = vmatmul.f32.gmra.mxu0 %v477
  %v597 = vpop.f32.mrf.mxu0
  %v598 = vadd.f32 %v575, %v597
  %599 = vmatmul.f32.gmra.mxu0 %v478
  %v600 = vpop.f32.mrf.mxu0
  %v601 = vadd.f32 %v578, %v600
  %602 = vdwg.mxu0
  %603 = vmatpush.msra.mxu0 %v538
  %604 = vmatpush.msra.mxu0 %v537
  %605 = vmatpush.msra.mxu0 %v536
  %606 = vmatpush.msra.mxu0 %v535
  %607 = vmatpush.msra.mxu0 %v534
  %608 = vmatpush.msra.mxu0 %v533
  %609 = vmatpush.msra.mxu0 %v532
  %610 = vmatpush.msra.mxu0 %v531
  %611 = vmatpush.msra.mxu0 %v530
  %612 = vmatpush.msra.mxu0 %v529
  %613 = vmatpush.msra.mxu0 %v528
  %614 = vmatpush.msra.mxu0 %v527
  %615 = vmatpush.msra.mxu0 %v526
  %616 = vmatpush.msra.mxu0 %v525
  %617 = vmatpush.msra.mxu0 %v524
  %618 = vmatpush.msra.mxu0 %v523
  %619 = vmatmul.f32.gmra.mxu0 %v483
  %v620 = vpop.f32.mrf.mxu0
  %v621 = vadd.f32 %v598, %v620
  %622 = vmatmul.f32.gmra.mxu0 %v484
  %v623 = vpop.f32.mrf.mxu0
  %v624 = vadd.f32 %v601, %v623
  %625 = vdwg.mxu0
  %626 = vmatpush.msra.mxu0 %v554
  %627 = vmatpush.msra.mxu0 %v553
  %628 = vmatpush.msra.mxu0 %v552
  %629 = vmatpush.msra.mxu0 %v551
  %630 = vmatpush.msra.mxu0 %v550
  %631 = vmatpush.msra.mxu0 %v549
  %632 = vmatpush.msra.mxu0 %v548
  %633 = vmatpush.msra.mxu0 %v547
  %634 = vmatpush.msra.mxu0 %v546
  %635 = vmatpush.msra.mxu0 %v545
  %636 = vmatpush.msra.mxu0 %v544
  %637 = vmatpush.msra.mxu0 %v543
  %638 = vmatpush.msra.mxu0 %v542
  %639 = vmatpush.msra.mxu0 %v541
  %640 = vmatpush.msra.mxu0 %v540
  %641 = vmatpush.msra.mxu0 %v539
  %642 = vmatmul.f32.gmra.mxu0 %v489
  %v643 = vpop.f32.mrf.mxu0
  %v644 = vadd.f32 %v621, %v643
  %645 = vmatmul.f32.gmra.mxu0 %v490
  %v646 = vpop.f32.mrf.mxu0
  %v647 = vadd.f32 %v624, %v646
  %648 = vdwg.mxu0
  %v649 = vmax.f32 %v644, 0.0
  %v650 = vmax.f32 %v647, 0.0
  %v652 = vrot.slane %v649, 1
  %653 = vrot.lane.b32.xlu0 %v652, 64
  %v654 = vpop.permute.xlu0 %653
  %v656 = vrot.slane %v649, 2
  %v658 = vrot.slane %v649, 3
  %659 = vrot.lane.b32.xlu0 %v658, 64
  %v660 = vpop.permute.xlu0 %659
  %v662 = vrot.slane %v649, 4
  %v664 = vrot.slane %v649, 5
  %665 = vrot.lane.b32.xlu0 %v664, 64
  %v666 = vpop.permute.xlu0 %665
  %v668 = vrot.slane %v649, 6
  %v670 = vrot.slane %v649, 7
  %671 = vrot.lane.b32.xlu0 %v670, 64
  %v672 = vpop.permute.xlu0 %671
  %v675 = vrot.slane %v650, 1
  %676 = vrot.lane.b32.xlu0 %v675, 64
  %v677 = vpop.permute.xlu0 %676
  %v679 = vrot.slane %v650, 2
  %v681 = vrot.slane %v650, 3
  %682 = vrot.lane.b32.xlu0 %v681, 64
  %v683 = vpop.permute.xlu0 %682
  %v685 = vrot.slane %v650, 4
  %v687 = vrot.slane %v650, 5
  %688 = vrot.lane.b32.xlu0 %v687, 64
  %v689 = vpop.permute.xlu0 %688
  %v691 = vrot.slane %v650, 6
  %v693 = vrot.slane %v650, 7
  %694 = vrot.lane.b32.xlu0 %v693, 64
  %v695 = vpop.permute.xlu0 %694
  %v697 = vsel %vm467, %v649, %v654
  %v698 = vsel %vm467, %v656, %v660
  %v699 = vsel %vm467, %v662, %v666
  %v700 = vsel %vm467, %v668, %v672
  %v701 = vsel %vm467, %v650, %v677
  %v702 = vsel %vm467, %v679, %v683
  %v703 = vsel %vm467, %v685, %v689
  %v704 = vsel %vm467, %v691, %v695
  %v705 = vld [vmem:[%s1 + $0x410] sm:$0xff]
  %v706 = vld [vmem:[%s1 + $0x418] sm:$0xff]
  %v707 = vld [vmem:[%s1 + $0x420] sm:$0xff]
  %v708 = vld [vmem:[%s1 + $0x428] sm:$0xff]
  %v709 = vld [vmem:[%s1 + $0x430] sm:$0xff]
  %v710 = vld [vmem:[%s1 + $0x438] sm:$0xff]
  %v711 = vld [vmem:[%s1 + $0x440] sm:$0xff]
  %v712 = vld [vmem:[%s1 + $0x448] sm:$0xff]
  %v713 = vld [vmem:[%s1 + $0x450] sm:$0xff]
  %v714 = vld [vmem:[%s1 + $0x458] sm:$0xff]
  %v715 = vld [vmem:[%s1 + $0x460] sm:$0xff]
  %v716 = vld [vmem:[%s1 + $0x468] sm:$0xff]
  %v717 = vld [vmem:[%s1 + $0x470] sm:$0xff]
  %v718 = vld [vmem:[%s1 + $0x478] sm:$0xff]
  %v719 = vld [vmem:[%s1 + $0x480] sm:$0xff]
  %v720 = vld [vmem:[%s1 + $0x488] sm:$0xff]
  %v721 = vld [vmem:[%s1 + $0x490] sm:$0xff]
  %v722 = vld [vmem:[%s1 + $0x498] sm:$0xff]
  %v723 = vld [vmem:[%s1 + $0x4a0] sm:$0xff]
  %v724 = vld [vmem:[%s1 + $0x4a8] sm:$0xff]
  %v725 = vld [vmem:[%s1 + $0x4b0] sm:$0xff]
  %v726 = vld [vmem:[%s1 + $0x4b8] sm:$0xff]
  %v727 = vld [vmem:[%s1 + $0x4c0] sm:$0xff]
  %v728 = vld [vmem:[%s1 + $0x4c8] sm:$0xff]
  %v729 = vld [vmem:[%s1 + $0x4d0] sm:$0xff]
  %v730 = vld [vmem:[%s1 + $0x4d8] sm:$0xff]
  %v731 = vld [vmem:[%s1 + $0x4e0] sm:$0xff]
  %v732 = vld [vmem:[%s1 + $0x4e8] sm:$0xff]
  %v733 = vld [vmem:[%s1 + $0x4f0] sm:$0xff]
  %v734 = vld [vmem:[%s1 + $0x4f8] sm:$0xff]
  %v735 = vld [vmem:[%s1 + $0x500] sm:$0xff]
  %v736 = vld [vmem:[%s1 + $0x508] sm:$0xff]
  %v737 = vld [vmem:[%s1 + $0x510] sm:$0xff]
  %v738 = vld [vmem:[%s1 + $0x518] sm:$0xff]
  %v739 = vld [vmem:[%s1 + $0x520] sm:$0xff]
  %v740 = vld [vmem:[%s1 + $0x528] sm:$0xff]
  %v741 = vld [vmem:[%s1 + $0x530] sm:$0xff]
  %v742 = vld [vmem:[%s1 + $0x538] sm:$0xff]
  %v743 = vld [vmem:[%s1 + $0x540] sm:$0xff]
  %v744 = vld [vmem:[%s1 + $0x548] sm:$0xff]
  %v745 = vld [vmem:[%s1 + $0x550] sm:$0xff]
  %v746 = vld [vmem:[%s1 + $0x558] sm:$0xff]
  %v747 = vld [vmem:[%s1 + $0x560] sm:$0xff]
  %v748 = vld [vmem:[%s1 + $0x568] sm:$0xff]
  %v749 = vld [vmem:[%s1 + $0x570] sm:$0xff]
  %v750 = vld [vmem:[%s1 + $0x578] sm:$0xff]
  %v751 = vld [vmem:[%s1 + $0x580] sm:$0xff]
  %v752 = vld [vmem:[%s1 + $0x588] sm:$0xff]
  %v753 = vld [vmem:[%s1 + $0x590] sm:$0xff]
  %v754 = vld [vmem:[%s1 + $0x598] sm:$0xff]
  %v755 = vld [vmem:[%s1 + $0x5a0] sm:$0xff]
  %v756 = vld [vmem:[%s1 + $0x5a8] sm:$0xff]
  %v757 = vld [vmem:[%s1 + $0x5b0] sm:$0xff]
  %v758 = vld [vmem:[%s1 + $0x5b8] sm:$0xff]
  %v759 = vld [vmem:[%s1 + $0x5c0] sm:$0xff]
  %v760 = vld [vmem:[%s1 + $0x5c8] sm:$0xff]
  %v761 = vld [vmem:[%s1 + $0x5d0] sm:$0xff]
  %v762 = vld [vmem:[%s1 + $0x5d8] sm:$0xff]
  %v763 = vld [vmem:[%s1 + $0x5e0] sm:$0xff]
  %v764 = vld [vmem:[%s1 + $0x5e8] sm:$0xff]
  %v765 = vld [vmem:[%s1 + $0x5f0] sm:$0xff]
  %v766 = vld [vmem:[%s1 + $0x5f8] sm:$0xff]
  %v767 = vld [vmem:[%s1 + $0x600] sm:$0xff]
  %v768 = vld [vmem:[%s1 + $0x608] sm:$0xff]
  %v769 = vld [vmem:[%s1 + $0x610] sm:$0xff]
  %v770 = vld [vmem:[%s1 + $0x618] sm:$0xff]
  %v771 = vld [vmem:[%s1 + $0x620] sm:$0xff]
  %v772 = vld [vmem:[%s1 + $0x628] sm:$0xff]
  %v773 = vld [vmem:[%s1 + $0x630] sm:$0xff]
  %v774 = vld [vmem:[%s1 + $0x638] sm:$0xff]
  %v775 = vld [vmem:[%s1 + $0x640] sm:$0xff]
  %v776 = vld [vmem:[%s1 + $0x648] sm:$0xff]
  %v777 = vld [vmem:[%s1 + $0x650] sm:$0xff]
  %v778 = vld [vmem:[%s1 + $0x658] sm:$0xff]
  %v779 = vld [vmem:[%s1 + $0x660] sm:$0xff]
  %v780 = vld [vmem:[%s1 + $0x668] sm:$0xff]
  %v781 = vld [vmem:[%s1 + $0x670] sm:$0xff]
  %v782 = vld [vmem:[%s1 + $0x678] sm:$0xff]
  %v783 = vld [vmem:[%s1 + $0x680] sm:$0xff]
  %v784 = vld [vmem:[%s1 + $0x688] sm:$0xff]
  %v785 = vld [vmem:[%s1 + $0x690] sm:$0xff]
  %v786 = vld [vmem:[%s1 + $0x698] sm:$0xff]
  %v787 = vld [vmem:[%s1 + $0x6a0] sm:$0xff]
  %v788 = vld [vmem:[%s1 + $0x6a8] sm:$0xff]
  %v789 = vld [vmem:[%s1 + $0x6b0] sm:$0xff]
  %v790 = vld [vmem:[%s1 + $0x6b8] sm:$0xff]
  %v791 = vld [vmem:[%s1 + $0x6c0] sm:$0xff]
  %v792 = vld [vmem:[%s1 + $0x6c8] sm:$0xff]
  %v793 = vld [vmem:[%s1 + $0x6d0] sm:$0xff]
  %v794 = vld [vmem:[%s1 + $0x6d8] sm:$0xff]
  %v795 = vld [vmem:[%s1 + $0x6e0] sm:$0xff]
  %v796 = vld [vmem:[%s1 + $0x6e8] sm:$0xff]
  %v797 = vld [vmem:[%s1 + $0x6f0] sm:$0xff]
  %v798 = vld [vmem:[%s1 + $0x6f8] sm:$0xff]
  %v799 = vld [vmem:[%s1 + $0x700] sm:$0xff]
  %v800 = vld [vmem:[%s1 + $0x708] sm:$0xff]
  %v801 = vld [vmem:[%s1 + $0x710] sm:$0xff]
  %v802 = vld [vmem:[%s1 + $0x718] sm:$0xff]
  %v803 = vld [vmem:[%s1 + $0x720] sm:$0xff]
  %v804 = vld [vmem:[%s1 + $0x728] sm:$0xff]
  %v805 = vld [vmem:[%s1 + $0x730] sm:$0xff]
  %v806 = vld [vmem:[%s1 + $0x738] sm:$0xff]
  %v807 = vld [vmem:[%s1 + $0x740] sm:$0xff]
  %v808 = vld [vmem:[%s1 + $0x748] sm:$0xff]
  %v809 = vld [vmem:[%s1 + $0x750] sm:$0xff]
  %v810 = vld [vmem:[%s1 + $0x758] sm:$0xff]
  %v811 = vld [vmem:[%s1 + $0x760] sm:$0xff]
  %v812 = vld [vmem:[%s1 + $0x768] sm:$0xff]
  %v813 = vld [vmem:[%s1 + $0x770] sm:$0xff]
  %v814 = vld [vmem:[%s1 + $0x778] sm:$0xff]
  %v815 = vld [vmem:[%s1 + $0x780] sm:$0xff]
  %v816 = vld [vmem:[%s1 + $0x788] sm:$0xff]
  %v817 = vld [vmem:[%s1 + $0x790] sm:$0xff]
  %v818 = vld [vmem:[%s1 + $0x798] sm:$0xff]
  %v819 = vld [vmem:[%s1 + $0x7a0] sm:$0xff]
  %v820 = vld [vmem:[%s1 + $0x7a8] sm:$0xff]
  %v821 = vld [vmem:[%s1 + $0x7b0] sm:$0xff]
  %v822 = vld [vmem:[%s1 + $0x7b8] sm:$0xff]
  %v823 = vld [vmem:[%s1 + $0x7c0] sm:$0xff]
  %v824 = vld [vmem:[%s1 + $0x7c8] sm:$0xff]
  %v825 = vld [vmem:[%s1 + $0x7d0] sm:$0xff]
  %v826 = vld [vmem:[%s1 + $0x7d8] sm:$0xff]
  %v827 = vld [vmem:[%s1 + $0x7e0] sm:$0xff]
  %v828 = vld [vmem:[%s1 + $0x7e8] sm:$0xff]
  %v829 = vld [vmem:[%s1 + $0x7f0] sm:$0xff]
  %v830 = vld [vmem:[%s1 + $0x7f8] sm:$0xff]
  %v831 = vld [vmem:[%s1 + $0x800] sm:$0xff]
  %v832 = vld [vmem:[%s1 + $0x808] sm:$0xff]
  %v833 = vld [vmem:[%s1 + $0x810] sm:$0x1]
  %834 = vmatpush.msra.mxu0 %v720
  %835 = vmatpush.msra.mxu0 %v719
  %836 = vmatpush.msra.mxu0 %v718
  %837 = vmatpush.msra.mxu0 %v717
  %838 = vmatpush.msra.mxu0 %v716
  %839 = vmatpush.msra.mxu0 %v715
  %840 = vmatpush.msra.mxu0 %v714
  %841 = vmatpush.msra.mxu0 %v713
  %842 = vmatpush.msra.mxu0 %v712
  %843 = vmatpush.msra.mxu0 %v711
  %844 = vmatpush.msra.mxu0 %v710
  %845 = vmatpush.msra.mxu0 %v709
  %846 = vmatpush.msra.mxu0 %v708
  %847 = vmatpush.msra.mxu0 %v707
  %848 = vmatpush.msra.mxu0 %v706
  %849 = vmatpush.msra.mxu0 %v705
  %850 = vmatmul.f32.gmra.mxu0 %v697
  %v851 = vpop.f32.mrf.mxu0
  %v852 = vadd.f32 %v833, %v851
  %853 = vdwg.mxu0
  %854 = vmatpush.msra.mxu0 %v736
  %855 = vmatpush.msra.mxu0 %v735
  %856 = vmatpush.msra.mxu0 %v734
  %857 = vmatpush.msra.mxu0 %v733
  %858 = vmatpush.msra.mxu0 %v732
  %859 = vmatpush.msra.mxu0 %v731
  %860 = vmatpush.msra.mxu0 %v730
  %861 = vmatpush.msra.mxu0 %v729
  %862 = vmatpush.msra.mxu0 %v728
  %863 = vmatpush.msra.mxu0 %v727
  %864 = vmatpush.msra.mxu0 %v726
  %865 = vmatpush.msra.mxu0 %v725
  %866 = vmatpush.msra.mxu0 %v724
  %867 = vmatpush.msra.mxu0 %v723
  %868 = vmatpush.msra.mxu0 %v722
  %869 = vmatpush.msra.mxu0 %v721
  %870 = vmatmul.f32.gmra.mxu0 %v698
  %v871 = vpop.f32.mrf.mxu0
  %v872 = vadd.f32 %v852, %v871
  %873 = vdwg.mxu0
  %874 = vmatpush.msra.mxu0 %v752
  %875 = vmatpush.msra.mxu0 %v751
  %876 = vmatpush.msra.mxu0 %v750
  %877 = vmatpush.msra.mxu0 %v749
  %878 = vmatpush.msra.mxu0 %v748
  %879 = vmatpush.msra.mxu0 %v747
  %880 = vmatpush.msra.mxu0 %v746
  %881 = vmatpush.msra.mxu0 %v745
  %882 = vmatpush.msra.mxu0 %v744
  %883 = vmatpush.msra.mxu0 %v743
  %884 = vmatpush.msra.mxu0 %v742
  %885 = vmatpush.msra.mxu0 %v741
  %886 = vmatpush.msra.mxu0 %v740
  %887 = vmatpush.msra.mxu0 %v739
  %888 = vmatpush.msra.mxu0 %v738
  %889 = vmatpush.msra.mxu0 %v737
  %890 = vmatmul.f32.gmra.mxu0 %v699
  %v891 = vpop.f32.mrf.mxu0
  %v892 = vadd.f32 %v872, %v891
  %893 = vdwg.mxu0
  %894 = vmatpush.msra.mxu0 %v768
  %895 = vmatpush.msra.mxu0 %v767
  %896 = vmatpush.msra.mxu0 %v766
  %897 = vmatpush.msra.mxu0 %v765
  %898 = vmatpush.msra.mxu0 %v764
  %899 = vmatpush.msra.mxu0 %v763
  %900 = vmatpush.msra.mxu0 %v762
  %901 = vmatpush.msra.mxu0 %v761
  %902 = vmatpush.msra.mxu0 %v760
  %903 = vmatpush.msra.mxu0 %v759
  %904 = vmatpush.msra.mxu0 %v758
  %905 = vmatpush.msra.mxu0 %v757
  %906 = vmatpush.msra.mxu0 %v756
  %907 = vmatpush.msra.mxu0 %v755
  %908 = vmatpush.msra.mxu0 %v754
  %909 = vmatpush.msra.mxu0 %v753
  %910 = vmatmul.f32.gmra.mxu0 %v700
  %v911 = vpop.f32.mrf.mxu0
  %v912 = vadd.f32 %v892, %v911
  %913 = vdwg.mxu0
  %914 = vmatpush.msra.mxu0 %v784
  %915 = vmatpush.msra.mxu0 %v783
  %916 = vmatpush.msra.mxu0 %v782
  %917 = vmatpush.msra.mxu0 %v781
  %918 = vmatpush.msra.mxu0 %v780
  %919 = vmatpush.msra.mxu0 %v779
  %920 = vmatpush.msra.mxu0 %v778
  %921 = vmatpush.msra.mxu0 %v777
  %922 = vmatpush.msra.mxu0 %v776
  %923 = vmatpush.msra.mxu0 %v775
  %924 = vmatpush.msra.mxu0 %v774
  %925 = vmatpush.msra.mxu0 %v773
  %926 = vmatpush.msra.mxu0 %v772
  %927 = vmatpush.msra.mxu0 %v771
  %928 = vmatpush.msra.mxu0 %v770
  %929 = vmatpush.msra.mxu0 %v769
  %930 = vmatmul.f32.gmra.mxu0 %v701
  %v931 = vpop.f32.mrf.mxu0
  %v932 = vadd.f32 %v912, %v931
  %933 = vdwg.mxu0
  %934 = vmatpush.msra.mxu0 %v800
  %935 = vmatpush.msra.mxu0 %v799
  %936 = vmatpush.msra.mxu0 %v798
  %937 = vmatpush.msra.mxu0 %v797
  %938 = vmatpush.msra.mxu0 %v796
  %939 = vmatpush.msra.mxu0 %v795
  %940 = vmatpush.msra.mxu0 %v794
  %941 = vmatpush.msra.mxu0 %v793
  %942 = vmatpush.msra.mxu0 %v792
  %943 = vmatpush.msra.mxu0 %v791
  %944 = vmatpush.msra.mxu0 %v790
  %945 = vmatpush.msra.mxu0 %v789
  %946 = vmatpush.msra.mxu0 %v788
  %947 = vmatpush.msra.mxu0 %v787
  %948 = vmatpush.msra.mxu0 %v786
  %949 = vmatpush.msra.mxu0 %v785
  %950 = vmatmul.f32.gmra.mxu0 %v702
  %v951 = vpop.f32.mrf.mxu0
  %v952 = vadd.f32 %v932, %v951
  %953 = vdwg.mxu0
  %954 = vmatpush.msra.mxu0 %v816
  %955 = vmatpush.msra.mxu0 %v815
  %956 = vmatpush.msra.mxu0 %v814
  %957 = vmatpush.msra.mxu0 %v813
  %958 = vmatpush.msra.mxu0 %v812
  %959 = vmatpush.msra.mxu0 %v811
  %960 = vmatpush.msra.mxu0 %v810
  %961 = vmatpush.msra.mxu0 %v809
  %962 = vmatpush.msra.mxu0 %v808
  %963 = vmatpush.msra.mxu0 %v807
  %964 = vmatpush.msra.mxu0 %v806
  %965 = vmatpush.msra.mxu0 %v805
  %966 = vmatpush.msra.mxu0 %v804
  %967 = vmatpush.msra.mxu0 %v803
  %968 = vmatpush.msra.mxu0 %v802
  %969 = vmatpush.msra.mxu0 %v801
  %970 = vmatmul.f32.gmra.mxu0 %v703
  %v971 = vpop.f32.mrf.mxu0
  %v972 = vadd.f32 %v952, %v971
  %973 = vdwg.mxu0
  %974 = vmatpush.msra.mxu0 %v832
  %975 = vmatpush.msra.mxu0 %v831
  %976 = vmatpush.msra.mxu0 %v830
  %977 = vmatpush.msra.mxu0 %v829
  %978 = vmatpush.msra.mxu0 %v828
  %979 = vmatpush.msra.mxu0 %v827
  %980 = vmatpush.msra.mxu0 %v826
  %981 = vmatpush.msra.mxu0 %v825
  %982 = vmatpush.msra.mxu0 %v824
  %983 = vmatpush.msra.mxu0 %v823
  %984 = vmatpush.msra.mxu0 %v822
  %985 = vmatpush.msra.mxu0 %v821
  %986 = vmatpush.msra.mxu0 %v820
  %987 = vmatpush.msra.mxu0 %v819
  %988 = vmatpush.msra.mxu0 %v818
  %989 = vmatpush.msra.mxu0 %v817
  %990 = vmatmul.f32.gmra.mxu0 %v704
  %v991 = vpop.f32.mrf.mxu0
  %v992 = vadd.f32 %v972, %v991
  %993 = vdwg.mxu0
  %v994 = vmax.f32 %v992, 0.0
  %v995 = vld [vmem:[%s1 + $0x818] sm:$0xff]
  %v996 = vld [vmem:[%s1 + $0x820] sm:$0xff]
  %v997 = vld [vmem:[%s1 + $0x828] sm:$0xff]
  %v998 = vld [vmem:[%s1 + $0x830] sm:$0xff]
  %v999 = vld [vmem:[%s1 + $0x838] sm:$0xff]
  %v1000 = vld [vmem:[%s1 + $0x840] sm:$0xff]
  %v1001 = vld [vmem:[%s1 + $0x848] sm:$0xff]
  %v1002 = vld [vmem:[%s1 + $0x850] sm:$0xff]
  %v1003 = vld [vmem:[%s1 + $0x858] sm:$0x1]
  %v1005 = vsel %vm467, %v994, 0
  %1007 = vmatpush.msra.mxu0 0.0
  %1008 = vmatpush.msra.mxu0 0.0
  %1009 = vmatpush.msra.mxu0 0.0
  %1010 = vmatpush.msra.mxu0 0.0
  %1011 = vmatpush.msra.mxu0 0.0
  %1012 = vmatpush.msra.mxu0 0.0
  %1013 = vmatpush.msra.mxu0 0.0
  %1014 = vmatpush.msra.mxu0 0.0
  %1015 = vmatpush.msra.mxu0 %v1002
  %1016 = vmatpush.msra.mxu0 %v1001
  %1017 = vmatpush.msra.mxu0 %v1000
  %1018 = vmatpush.msra.mxu0 %v999
  %1019 = vmatpush.msra.mxu0 %v998
  %1020 = vmatpush.msra.mxu0 %v997
  %1021 = vmatpush.msra.mxu0 %v996
  %1022 = vmatpush.msra.mxu0 %v995
  %1023 = vmatmul.f32.gmra.mxu0 %v1005
  %v1024 = vpop.f32.mrf.mxu0
  %v1025 = vadd.f32 %v1003, %v1024
  %1026 = vdwg.mxu0
  %v1027 = vmax.f32 %v1025, 0.0
  %v1028 = vld [vmem:[%s1 + $0x860] sm:$0xff]
  %v1029 = vld [vmem:[%s1 + $0x868] sm:$0xff]
  %v1030 = vld [vmem:[%s1 + $0x870] sm:$0xff]
  %v1031 = vld [vmem:[%s1 + $0x878] sm:$0xff]
  %v1032 = vld [vmem:[%s1 + $0x880] sm:$0x1]
  %v1034 = vsel %vm464, %v1027, 0
  %1036 = vmatpush.msra.mxu0 0.0
  %1037 = vmatpush.msra.mxu0 0.0
  %1038 = vmatpush.msra.mxu0 0.0
  %1039 = vmatpush.msra.mxu0 0.0
  %1040 = vmatpush.msra.mxu0 0.0
  %1041 = vmatpush.msra.mxu0 0.0
  %1042 = vmatpush.msra.mxu0 0.0
  %1043 = vmatpush.msra.mxu0 0.0
  %1044 = vmatpush.msra.mxu0 0.0
  %1045 = vmatpush.msra.mxu0 0.0
  %1046 = vmatpush.msra.mxu0 0.0
  %1047 = vmatpush.msra.mxu0 0.0
  %1048 = vmatpush.msra.mxu0 %v1031
  %1049 = vmatpush.msra.mxu0 %v1030
  %1050 = vmatpush.msra.mxu0 %v1029
  %1051 = vmatpush.msra.mxu0 %v1028
  %1052 = vmatmul.f32.gmra.mxu0 %v1034
  %v1053 = vpop.f32.mrf.mxu0
  %v1054 = vadd.f32 %v1032, %v1053
  %1055 = vdwg.mxu0
  %vm1056 = vcmask 24576
  %v1057 = vsel %vm1056, %v1054, -inf
  %1058 = vmax.xlane.f32.xlu0 %v1057
  %v1059 = vpop.xlane.xlu0 %1058
  %v1060 = vsub.f32 %v1054, %v1059
  %v1061 = vmul.f32 %v1060, 1.442695
  %v1062 = vpow.pop %v1061
  %v1063 = vsel %vm1056, %v1062, 0.0
  %1064 = vadd.xlane.f32.xlu0 %v1063
  %v1065 = vpop.xlane.xlu0 %1064
  %v1066 = vrcp.pop %v1065
  %v1067 = vmul.f32 %v1065, %v1066
  %v1068 = vsub.f32 1.0, %v1067
  %v1069 = vmul.f32 %v1066, %v1068
  %v1070 = vadd.f32 %v1066, %v1069
  %vm1071 = vweird.f32 %v1065
  %vm1072 = vweird.f32 %v1066
  %vm1073 = vmor %vm1071, %vm1072
  %v1074 = vsel %vm1073, %v1066, %v1070
  %v1075 = vand.u32 2147483647, %v1065
  %vm1076 = vcmp.eq.f32.partialorder %v1075, 8.507059e+37
  %v1077 = vand.u32 %v1065, 2147483648
  %v1078 = vor.u32 1.1754944e-38, %v1077
  %v1079 = vsel %vm1076, %v1078, %v1074
  %v1080 = vmul.f32 %v1062, %v1079
  %vm1081 = vcmask 31744
  %v1082 = vsel %vm1081, %v1080, %v1054
  %vm1083 = vcmask 32768
  %1084 = vst.msk [vmem:[%s2] sm:$0x1] %vm1083, %v1082
  // Predicated region
  $region10: #{cnn_ac_forward.1} parent=0 // pred_check
    _
  $region11: #{cnn_ac_forward.1} parent=0 // pred_check_branch
    %1086 = sbr.rel (0) target = $region13
  $region12: #{cnn_ac_forward.1} parent=0 // pred_region
    _
  $region13: #{cnn_ac_forward.1} parent=0 // pred_fallthru
    _
  // Predicated region
  $region14: #{cnn_ac_forward.1} parent=0 // pred_check
    _
  $region15: #{cnn_ac_forward.1} parent=0 // pred_check_branch
    %1088 = sbr.rel (0) target = $region17
  $region16: #{cnn_ac_forward.1} parent=0 // pred_region
    _
  $region17: #{cnn_ac_forward.1} parent=0 // pred_fallthru
    _

</llo_original>
